<compile_context>
chip_gen: v6e
topology: v6e:2x2x1
jax: 0.10.0
libtpu: 0.0.40
codegen_flags: <defaults>
</compile_context>

<pallas_src>
import functools

import jax
import jax.numpy as jnp
from jax.experimental import pallas as pl
from jax.experimental.pallas import tpu as pltpu

_LANE = 128
_SUBLANE = 16  # bf16 sublane packing; also a multiple of the f32 sublane (8)


def _round_up(x, m):
    return (x + m - 1) // m * m


def _qnet_kernel(sa_ref, w1_ref, b1_ref, w2_ref, b2_ref, w3_ref, b3_ref,
                 out_ref):
    """Fused 3-layer MLP on one batch block.

    sa_ref already holds cat([s, a]) in the MXU-operand dtype (bf16 default),
    so fc1 is a single small-K matmul.  Accumulation / bias / relu in f32.
    """
    wd = w1_ref.dtype

    # fc1: cat([s, a]) @ W1 + b1 (concat was fused in the wrapper)
    x = jnp.dot(sa_ref[...], w1_ref[...], preferred_element_type=jnp.float32)
    x = jnp.maximum(x + b1_ref[...], 0.0)

    # fc2
    x = jnp.dot(x.astype(wd), w2_ref[...], preferred_element_type=jnp.float32)
    x = jnp.maximum(x + b2_ref[...], 0.0)

    # fc3 (no activation)
    q = jnp.dot(x.astype(wd), w3_ref[...], preferred_element_type=jnp.float32)
    out_ref[...] = (q + b3_ref[...]).astype(out_ref.dtype)


def prepare_params(params, *, compute_dtype=jnp.bfloat16):
    """One-time prep outside the hot path.

    * Weights stored [in, out] (transposed vs PyTorch's [out, in]).
    * fc1 input dim (state+action) is padded only to a 16-row sublane
      multiple, NOT to 128; hidden / num_quantiles pad to 128-lane multiples.
    * Weights cast to the MXU-operand dtype (bf16 default on v5e/v6e/v7x).
      Biases stay f32.  Note: intermediate activations are also re-quantized
      to `compute_dtype` at each dot input (not weight-only quantization).
    * Biases of shape (H,) or (1, H) are both accepted.
    """
    w1 = jnp.asarray(params["w1"])
    w2 = jnp.asarray(params["w2"])
    w3 = jnp.asarray(params["w3"])
    b1 = jnp.asarray(params["b1"]).reshape(1, -1)
    b2 = jnp.asarray(params["b2"]).reshape(1, -1)
    b3 = jnp.asarray(params["b3"]).reshape(1, -1)

    dsa, hidden = w1.shape
    num_q = w3.shape[1]
    dsa_p = _round_up(dsa, _SUBLANE)
    h_p = _round_up(hidden, _LANE)
    q_p = _round_up(num_q, _LANE)

    def pad2(x, shape):
        return jnp.pad(x, [(0, t - c) for c, t in zip(x.shape, shape)])

    return {
        "w1": pad2(w1, (dsa_p, h_p)).astype(compute_dtype),
        "b1": pad2(b1, (1, h_p)).astype(jnp.float32),
        "w2": pad2(w2, (h_p, h_p)).astype(compute_dtype),
        "b2": pad2(b2, (1, h_p)).astype(jnp.float32),
        "w3": pad2(w3, (h_p, q_p)).astype(compute_dtype),
        "b3": pad2(b3, (1, q_p)).astype(jnp.float32),
    }


def _pick_block_b(batch):
    """>=2 blocks when possible (v7x megacore), <=512 rows/block so single-TC
    v5e/v6e amortize per-step grid overhead; always a multiple of 8."""
    return min(512, max(8, _round_up((batch + 1) // 2, 8)))


@functools.partial(jax.jit, static_argnames=("num_quantiles", "block_b"))
def distributional_q_forward(s, a, kparams, *, num_quantiles, block_b=None):
    """s [B, state_dim], a [B, action_dim] -> quantiles [B, num_quantiles]."""
    B = s.shape[0]
    dsa = s.shape[1] + a.shape[1]
    dsa_p, h_p = kparams["w1"].shape
    q_p = kparams["w3"].shape[1]
    cdt = kparams["w1"].dtype

    if block_b is None:
        block_b = _pick_block_b(B)
    b_p = _round_up(B, block_b)

    # Fuse torch.cat here (tiny buffer), cast to the MXU-operand dtype once,
    # and pad only the batch dim (plus at most 15 zero feature columns).
    sa = jnp.concatenate([s.astype(cdt), a.astype(cdt)], axis=-1)
    sa = jnp.pad(sa, ((0, b_p - B), (0, dsa_p - dsa)))

    grid = (b_p // block_b,)

    flops = 2 * b_p * (dsa_p * h_p + h_p * h_p + h_p * q_p)
    bytes_accessed = (
        b_p * dsa_p * sa.dtype.itemsize
        + sum(v.size * v.dtype.itemsize for v in kparams.values())
        + b_p * q_p * 4)

    out = pl.pallas_call(
        _qnet_kernel,
        out_shape=jax.ShapeDtypeStruct((b_p, q_p), jnp.float32),
        grid=grid,
        in_specs=[
            # Per-block batch tile of the fused [B, Dsa] input (small K).
            pl.BlockSpec((block_b, dsa_p), lambda i: (i, 0)),
            # Weights / biases: constant index_maps -> fetched once and kept
            # resident across all batch blocks.
            pl.BlockSpec((dsa_p, h_p), lambda i: (0, 0)),   # W1
            pl.BlockSpec((1, h_p), lambda i: (0, 0)),       # b1
            pl.BlockSpec((h_p, h_p), lambda i: (0, 0)),     # W2
            pl.BlockSpec((1, h_p), lambda i: (0, 0)),       # b2
            pl.BlockSpec((h_p, q_p), lambda i: (0, 0)),     # W3
            pl.BlockSpec((1, q_p), lambda i: (0, 0)),       # b3
        ],
        out_specs=pl.BlockSpec((block_b, q_p), lambda i: (i, 0)),
        compiler_params=pltpu.CompilerParams(
            # Parallel batch axis -> sharded across both TCs on v7x.
            dimension_semantics=("parallel",),
        ),
        cost_estimate=pl.CostEstimate(
            flops=flops, transcendentals=0, bytes_accessed=bytes_accessed),
    )(sa, kparams["w1"], kparams["b1"], kparams["w2"], kparams["b2"],
      kparams["w3"], kparams["b3"])

    return out[:B, :num_quantiles]


def init_params(key, state_dim, action_dim, num_quantiles, hidden):
    """Deterministic init matching nn.Linear defaults (uniform +/- 1/sqrt(fan_in)).
    Weights stored as [in, out] (transposed vs PyTorch's [out, in])."""
    def linear_init(k, fan_in, fan_out):
        k_w, k_b = jax.random.split(k)
        bound = 1.0 / jnp.sqrt(fan_in)
        w = jax.random.uniform(k_w, (fan_in, fan_out), jnp.float32, -bound, bound)
        b = jax.random.uniform(k_b, (fan_out,), jnp.float32, -bound, bound)
        return w, b

    k1, k2, k3 = jax.random.split(key, 3)
    in_dim = state_dim + action_dim
    w1, b1 = linear_init(k1, in_dim, hidden)
    w2, b2 = linear_init(k2, hidden, hidden)
    w3, b3 = linear_init(k3, hidden, num_quantiles)
    return {"w1": w1, "b1": b1, "w2": w2, "b2": b2, "w3": w3, "b3": b3}


def reference_forward(s, a, params):
    sa = jnp.concatenate([s, a], axis=-1)
    x = jax.nn.relu(sa @ params["w1"] + params["b1"][None, :])
    x = jax.nn.relu(x @ params["w2"] + params["b2"][None, :])
    return x @ params["w3"] + params["b3"][None, :]


if __name__ == "__main__":
    # Small shapes consistent with the module's forward.
    batch = 8
    state_dim = 12
    action_dim = 4
    hidden = 32
    num_quantiles = 16

    key = jax.random.PRNGKey(0)
    k_s, k_a, k_p = jax.random.split(key, 3)

    s = jax.random.normal(k_s, (batch, state_dim), jnp.float32)
    a = jax.random.normal(k_a, (batch, action_dim), jnp.float32)
    params = init_params(k_p, state_dim, action_dim, num_quantiles, hidden)
    ref = jax.block_until_ready(reference_forward(s, a, params))

    # f32 MXU-operand path: tight tolerance vs the pure-JAX reference.
    kparams_f32 = prepare_params(params, compute_dtype=jnp.float32)
    q_f32 = jax.block_until_ready(
        distributional_q_forward(s, a, kparams_f32, num_quantiles=num_quantiles))
    assert q_f32.shape == (batch, num_quantiles)
    assert jnp.allclose(q_f32, ref, atol=1e-4, rtol=1e-4), "f32 mismatch vs reference"

    # bf16 MXU-operand path (default fast path on v5e/v6e/v7x): loose tolerance.
    kparams_bf16 = prepare_params(params)  # compute_dtype defaults to bf16
    q_bf16 = jax.block_until_ready(
        distributional_q_forward(s, a, kparams_bf16, num_quantiles=num_quantiles))
    assert q_bf16.shape == (batch, num_quantiles)
    assert jnp.allclose(q_bf16, ref, atol=5e-2, rtol=5e-2), "bf16 mismatch vs reference"

    print("KERNEL_OK")
</pallas_src>

<mosaic_0001>
module attributes {stable_mosaic.version = 11 : i64} {
  func.func @_qnet_kernel(%arg0: i32, %arg1: memref<8x16xf32, #tpu.memory_space<vmem>>, %arg2: memref<16x128xf32, #tpu.memory_space<vmem>>, %arg3: memref<1x128xf32, #tpu.memory_space<vmem>>, %arg4: memref<128x128xf32, #tpu.memory_space<vmem>>, %arg5: memref<1x128xf32, #tpu.memory_space<vmem>>, %arg6: memref<128x128xf32, #tpu.memory_space<vmem>>, %arg7: memref<1x128xf32, #tpu.memory_space<vmem>>, %arg8: memref<8x128xf32, #tpu.memory_space<vmem>>) attributes {dimension_semantics = [#tpu.dimension_semantics<parallel>], iteration_bounds = array<i64: 1>, scalar_prefetch = 0 : i64, scratch_operands = 0 : i64, tpu.core_type = #tpu.core_type<tc>, window_params = [{transform_indices = @transform_0, window_bounds = array<i64: 8, 16>}, {pipeline_mode = #tpu.pipeline_mode<synchronous>, transform_indices = @transform_1, window_bounds = array<i64: 16, 128>}, {pipeline_mode = #tpu.pipeline_mode<synchronous>, transform_indices = @transform_2, window_bounds = array<i64: 1, 128>}, {pipeline_mode = #tpu.pipeline_mode<synchronous>, transform_indices = @transform_3, window_bounds = array<i64: 128, 128>}, {pipeline_mode = #tpu.pipeline_mode<synchronous>, transform_indices = @transform_4, window_bounds = array<i64: 1, 128>}, {pipeline_mode = #tpu.pipeline_mode<synchronous>, transform_indices = @transform_5, window_bounds = array<i64: 128, 128>}, {pipeline_mode = #tpu.pipeline_mode<synchronous>, transform_indices = @transform_6, window_bounds = array<i64: 1, 128>}, {transform_indices = @transform_7, window_bounds = array<i64: 8, 128>}]} {
    %c0 = arith.constant 0 : index
    %c0_0 = arith.constant 0 : index
    %0 = vector.load %arg1[%c0, %c0_0] : memref<8x16xf32, #tpu.memory_space<vmem>>, vector<8x16xf32>
    %c0_1 = arith.constant 0 : index
    %c0_2 = arith.constant 0 : index
    %1 = vector.load %arg2[%c0_1, %c0_2] : memref<16x128xf32, #tpu.memory_space<vmem>>, vector<16x128xf32>
    %cst = arith.constant dense<0.000000e+00> : vector<8x128xf32>
    %2 = tpu.matmul %0, %1, %cst {dimension_numbers = #tpu.dot_dimension_numbers<[1], [0], [0], [1], [0, 0, 1, 1], [], []>} : vector<8x16xf32>, vector<16x128xf32>, vector<8x128xf32> -> vector<8x128xf32>
    %c0_3 = arith.constant 0 : index
    %c0_4 = arith.constant 0 : index
    %3 = vector.load %arg3[%c0_3, %c0_4] : memref<1x128xf32, #tpu.memory_space<vmem>>, vector<1x128xf32>
    %4 = vector.broadcast %3 : vector<1x128xf32> to vector<8x128xf32>
    %5 = arith.addf %2, %4 : vector<8x128xf32>
    %cst_5 = arith.constant 0.000000e+00 : f32
    %6 = vector.broadcast %cst_5 : f32 to vector<8x128xf32>
    %7 = arith.maximumf %5, %6 : vector<8x128xf32>
    %c0_6 = arith.constant 0 : index
    %c0_7 = arith.constant 0 : index
    %8 = vector.load %arg4[%c0_6, %c0_7] : memref<128x128xf32, #tpu.memory_space<vmem>>, vector<128x128xf32>
    %cst_8 = arith.constant dense<0.000000e+00> : vector<8x128xf32>
    %9 = tpu.matmul %7, %8, %cst_8 {dimension_numbers = #tpu.dot_dimension_numbers<[1], [0], [0], [1], [0, 0, 1, 1], [], []>} : vector<8x128xf32>, vector<128x128xf32>, vector<8x128xf32> -> vector<8x128xf32>
    %c0_9 = arith.constant 0 : index
    %c0_10 = arith.constant 0 : index
    %10 = vector.load %arg5[%c0_9, %c0_10] : memref<1x128xf32, #tpu.memory_space<vmem>>, vector<1x128xf32>
    %11 = vector.broadcast %10 : vector<1x128xf32> to vector<8x128xf32>
    %12 = arith.addf %9, %11 : vector<8x128xf32>
    %cst_11 = arith.constant 0.000000e+00 : f32
    %13 = vector.broadcast %cst_11 : f32 to vector<8x128xf32>
    %14 = arith.maximumf %12, %13 : vector<8x128xf32>
    %c0_12 = arith.constant 0 : index
    %c0_13 = arith.constant 0 : index
    %15 = vector.load %arg6[%c0_12, %c0_13] : memref<128x128xf32, #tpu.memory_space<vmem>>, vector<128x128xf32>
    %cst_14 = arith.constant dense<0.000000e+00> : vector<8x128xf32>
    %16 = tpu.matmul %14, %15, %cst_14 {dimension_numbers = #tpu.dot_dimension_numbers<[1], [0], [0], [1], [0, 0, 1, 1], [], []>} : vector<8x128xf32>, vector<128x128xf32>, vector<8x128xf32> -> vector<8x128xf32>
    %c0_15 = arith.constant 0 : index
    %c0_16 = arith.constant 0 : index
    %17 = vector.load %arg7[%c0_15, %c0_16] : memref<1x128xf32, #tpu.memory_space<vmem>>, vector<1x128xf32>
    %18 = vector.broadcast %17 : vector<1x128xf32> to vector<8x128xf32>
    %19 = arith.addf %16, %18 : vector<8x128xf32>
    %c0_17 = arith.constant 0 : index
    %c0_18 = arith.constant 0 : index
    %20 = vector.load %arg8[%c0_17, %c0_18] : memref<8x128xf32, #tpu.memory_space<vmem>>, vector<8x128xf32>
    tpu.vector_store %arg8[%c0_17, %c0_18], %19 {strides = array<i32>} : memref<8x128xf32, #tpu.memory_space<vmem>>, vector<8x128xf32>,
    return
  }
  func.func @transform_0(%arg0: i32) -> (i32, i32) {
    %c0_i32 = arith.constant 0 : i32
    %c0_i32_0 = arith.constant 0 : i32
    return %arg0, %c0_i32 : i32, i32
  }
  func.func @transform_1(%arg0: i32) -> (i32, i32) {
    %c0_i32 = arith.constant 0 : i32
    %c0_i32_0 = arith.constant 0 : i32
    %c0_i32_1 = arith.constant 0 : i32
    return %c0_i32, %c0_i32_0 : i32, i32
  }
  func.func @transform_2(%arg0: i32) -> (i32, i32) {
    %c0_i32 = arith.constant 0 : i32
    %c0_i32_0 = arith.constant 0 : i32
    %c0_i32_1 = arith.constant 0 : i32
    return %c0_i32, %c0_i32_0 : i32, i32
  }
  func.func @transform_3(%arg0: i32) -> (i32, i32) {
    %c0_i32 = arith.constant 0 : i32
    %c0_i32_0 = arith.constant 0 : i32
    %c0_i32_1 = arith.constant 0 : i32
    return %c0_i32, %c0_i32_0 : i32, i32
  }
  func.func @transform_4(%arg0: i32) -> (i32, i32) {
    %c0_i32 = arith.constant 0 : i32
    %c0_i32_0 = arith.constant 0 : i32
    %c0_i32_1 = arith.constant 0 : i32
    return %c0_i32, %c0_i32_0 : i32, i32
  }
  func.func @transform_5(%arg0: i32) -> (i32, i32) {
    %c0_i32 = arith.constant 0 : i32
    %c0_i32_0 = arith.constant 0 : i32
    %c0_i32_1 = arith.constant 0 : i32
    return %c0_i32, %c0_i32_0 : i32, i32
  }
  func.func @transform_6(%arg0: i32) -> (i32, i32) {
    %c0_i32 = arith.constant 0 : i32
    %c0_i32_0 = arith.constant 0 : i32
    %c0_i32_1 = arith.constant 0 : i32
    return %c0_i32, %c0_i32_0 : i32, i32
  }
  func.func @transform_7(%arg0: i32) -> (i32, i32) {
    %c0_i32 = arith.constant 0 : i32
    %c0_i32_0 = arith.constant 0 : i32
    return %arg0, %c0_i32 : i32, i32
  }
}

</mosaic_0001>

<llo_original>
// kernel: distributional_q_forward.1
$region0: #{distributional_q_forward.1}
  #allocation0 [shape = 'u32[]', space=smem, size = 0x4, offset = 0x4, fixed_abs, tag = 'smem constant byte address 0x4 - core index']
  #allocation1 [shape = 'u32[144,128]{1,0:T(1,128)}', space=vmem, size = 0x12000, scoped, tag = 'internal scratch']
  %s0 = inlined_call_operand.vmem [shape: f32[8,16], index: 0, kind: input, shape index: {}]
  %s1 = inlined_call_operand.vmem [shape: f32[16,128], index: 1, kind: input, shape index: {}]
  %s2 = inlined_call_operand.vmem [shape: f32[1,128], index: 2, kind: input, shape index: {}]
  %s3 = inlined_call_operand.hbm [shape: f32[128,128], index: 3, kind: input, shape index: {}]
  %s4 = inlined_call_operand.vmem [shape: f32[1,128], index: 4, kind: input, shape index: {}]
  %s5 = inlined_call_operand.hbm [shape: f32[128,128], index: 5, kind: input, shape index: {}]
  %s6 = inlined_call_operand.vmem [shape: f32[1,128], index: 6, kind: input, shape index: {}]
  %s7 = inlined_call_operand.hbm [shape: f32[8,128], index: 7, kind: output, shape index: {}]
  %s8 = sld [smem:[#allocation0]]
  $region46: #{distributional_q_forward.1} parent=0
    _
  %s10 = ssub.s32 1, %s8
  %s11 = scalar_select 0, %s10, %s8
  $region1: #{distributional_q_forward.1} parent=0
    #allocation2 [shape = 'u8[65536]{0}', space=vmem, size = 0x10000, scoped, tag = 'input window, operand 3, single buffered']
    #allocation3 [shape = 's32[1]{0}', space=sflag, size = 0x4, scoped, tag = 'scoped memory for distributional_q_forward.1']
    #allocation4 [shape = 's32[1]{0}', space=sflag, size = 0x4, scoped, tag = 'scoped memory for distributional_q_forward.1']
    #allocation5 [shape = 'u8[65536]{0}', space=vmem, size = 0x10000, scoped, tag = 'input window, operand 5, single buffered']
    #allocation6 [shape = 's32[1]{0}', space=sflag, size = 0x4, scoped, tag = 'scoped memory for distributional_q_forward.1']
    #allocation7 [shape = 'u8[4096]{0}', space=vmem, size = 0x1000, scoped, tag = 'output window, operand 0, single buffered']
    %12 = vsyncpa [#allocation3], 0
    %13 = vsyncpa [#allocation6], 0
    %14 = vsyncpa [#allocation4], 0
    // Predicated region
    $region2: #{distributional_q_forward.1} parent=1 // pred_check
      _
    $region3: #{distributional_q_forward.1} parent=1 // pred_check_branch
      %16 = sbr.rel (0) target = $region5
    $region4: #{distributional_q_forward.1} parent=1 // pred_region
      _
    $region5: #{distributional_q_forward.1} parent=1 // pred_fallthru
      _
    // Predicated region
    $region6: #{distributional_q_forward.1} parent=1 // pred_check
      _
    $region7: #{distributional_q_forward.1} parent=1 // pred_check_branch
      %18 = sbr.rel (0) target = $region9
    $region8: #{distributional_q_forward.1} parent=1 // pred_region
      _
    $region9: #{distributional_q_forward.1} parent=1 // pred_fallthru
      _
    // Predicated region
    $region10: #{distributional_q_forward.1} parent=1 // pred_check
      _
    $region11: #{distributional_q_forward.1} parent=1 // pred_check_branch
      %20 = sbr.rel (0) target = $region13
    $region12: #{distributional_q_forward.1} parent=1 // pred_region
      _
    $region13: #{distributional_q_forward.1} parent=1 // pred_fallthru
      _
    // Predicated region
    $region14: #{distributional_q_forward.1} parent=1 // pred_check
      _
    $region15: #{distributional_q_forward.1} parent=1 // pred_check_branch
      %22 = sbr.rel (0) target = $region17
    $region16: #{distributional_q_forward.1} parent=1 // pred_region
      %s24 = ssub.s32 2048, 2048
      %25 = vsyncadd [#allocation3], %s24
      %s26 = sshll.u32 [#allocation2], 4
      %s27 = int_to_ptr.vmem [resolvable:$true] %s26
      %32 = dma.hbm_to_vmem [thread:$0]  %s3, 2048, %s27, [#allocation3], 128, 128, 8
    $region17: #{distributional_q_forward.1} parent=1 // pred_fallthru
      _
    // Predicated region
    $region18: #{distributional_q_forward.1} parent=1 // pred_check
      _
    $region19: #{distributional_q_forward.1} parent=1 // pred_check_branch
      %34 = sbr.rel (0) target = $region21
    $region20: #{distributional_q_forward.1} parent=1 // pred_region
      _
    $region21: #{distributional_q_forward.1} parent=1 // pred_fallthru
      _
    // Predicated region
    $region22: #{distributional_q_forward.1} parent=1 // pred_check
      _
    $region23: #{distributional_q_forward.1} parent=1 // pred_check_branch
      %36 = sbr.rel (0) target = $region25
    $region24: #{distributional_q_forward.1} parent=1 // pred_region
      %s38 = ssub.s32 2048, 2048
      %39 = vsyncadd [#allocation6], %s38
      %s40 = sshll.u32 [#allocation5], 4
      %s41 = int_to_ptr.vmem [resolvable:$true] %s40
      %46 = dma.hbm_to_vmem [thread:$0]  %s5, 2048, %s41, [#allocation6], 128, 128, 8
    $region25: #{distributional_q_forward.1} parent=1 // pred_fallthru
      _
    // Predicated region
    $region26: #{distributional_q_forward.1} parent=1 // pred_check
      _
    $region27: #{distributional_q_forward.1} parent=1 // pred_check_branch
      %48 = sbr.rel (0) target = $region29
    $region28: #{distributional_q_forward.1} parent=1 // pred_region
      _
    $region29: #{distributional_q_forward.1} parent=1 // pred_fallthru
      _
    // Predicated region
    $region30: #{distributional_q_forward.1} parent=1 // pred_check
      _
    $region31: #{distributional_q_forward.1} parent=1 // pred_check_branch
      %50 = sbr.rel (0) target = $region33
    $region32: #{distributional_q_forward.1} parent=1 // pred_region
      %51 = dma.done [#allocation3], 2048
    $region33: #{distributional_q_forward.1} parent=1 // pred_fallthru
      _
    // Predicated region
    $region34: #{distributional_q_forward.1} parent=1 // pred_check
      _
    $region35: #{distributional_q_forward.1} parent=1 // pred_check_branch
      %53 = sbr.rel (0) target = $region37
    $region36: #{distributional_q_forward.1} parent=1 // pred_region
      %54 = dma.done [#allocation6], 2048
    $region37: #{distributional_q_forward.1} parent=1 // pred_fallthru
      _
    %v55 = vld [vmem:[%s0] sm:$0xff]
    %v56 = vld [vmem:[%s1] sm:$0xff]
    %v57 = vld [vmem:[%s1 + $0x8] sm:$0xff]
    %v58 = vld [vmem:[%s2] sm:$0x1]
    %v60 = vlaneseq
    %v61 = vshrl.u32 %v60, 7
    %v62 = vsub.s32 0, %v61
    %v63 = vrot.slane %v58, %v62
    %vm65 = vcmask 130048
    %v67 = vsel %vm65, %v55, 0
    %69 = vmatprep.subr.mxu0 0.0
    %70 = vmatpush1.msra.mxu0 0.0
    %71 = vmatprep.subr.mxu0 0.0
    %72 = vmatpush1.msra.mxu0 0.0
    %73 = vmatprep.subr.mxu0 0.0
    %74 = vmatpush1.msra.mxu0 0.0
    %75 = vmatprep.subr.mxu0 0.0
    %76 = vmatpush1.msra.mxu0 0.0
    %77 = vmatprep.subr.mxu0 0.0
    %78 = vmatpush1.msra.mxu0 0.0
    %79 = vmatprep.subr.mxu0 0.0
    %80 = vmatpush1.msra.mxu0 0.0
    %81 = vmatprep.subr.mxu0 0.0
    %82 = vmatpush1.msra.mxu0 0.0
    %83 = vmatprep.subr.mxu0 0.0
    %84 = vmatpush1.msra.mxu0 0.0
    %85 = vmatprep.subr.mxu0 0.0
    %86 = vmatpush1.msra.mxu0 0.0
    %87 = vmatprep.subr.mxu0 0.0
    %88 = vmatpush1.msra.mxu0 0.0
    %89 = vmatprep.subr.mxu0 0.0
    %90 = vmatpush1.msra.mxu0 0.0
    %91 = vmatprep.subr.mxu0 0.0
    %92 = vmatpush1.msra.mxu0 0.0
    %93 = vmatprep.subr.mxu0 0.0
    %94 = vmatpush1.msra.mxu0 0.0
    %95 = vmatprep.subr.mxu0 0.0
    %96 = vmatpush1.msra.mxu0 0.0
    %97 = vmatprep.subr.mxu0 0.0
    %98 = vmatpush1.msra.mxu0 %v57
    %99 = vmatprep.subr.mxu0 0.0
    %100 = vmatpush1.msra.mxu0 %v56
    %101 = vmatprep.subr.mxu0 0.0
    %102 = vmatpush2.msra.mxu0 0.0
    %103 = vmatprep.subr.mxu0 0.0
    %104 = vmatpush2.msra.mxu0 0.0
    %105 = vmatprep.subr.mxu0 0.0
    %106 = vmatpush2.msra.mxu0 0.0
    %107 = vmatprep.subr.mxu0 0.0
    %108 = vmatpush2.msra.mxu0 0.0
    %109 = vmatprep.subr.mxu0 0.0
    %110 = vmatpush2.msra.mxu0 0.0
    %111 = vmatprep.subr.mxu0 0.0
    %112 = vmatpush2.msra.mxu0 0.0
    %113 = vmatprep.subr.mxu0 0.0
    %114 = vmatpush2.msra.mxu0 0.0
    %115 = vmatprep.subr.mxu0 0.0
    %116 = vmatpush2.msra.mxu0 0.0
    %117 = vmatprep.subr.mxu0 0.0
    %118 = vmatpush2.msra.mxu0 0.0
    %119 = vmatprep.subr.mxu0 0.0
    %120 = vmatpush2.msra.mxu0 0.0
    %121 = vmatprep.subr.mxu0 0.0
    %122 = vmatpush2.msra.mxu0 0.0
    %123 = vmatprep.subr.mxu0 0.0
    %124 = vmatpush2.msra.mxu0 0.0
    %125 = vmatprep.subr.mxu0 0.0
    %126 = vmatpush2.msra.mxu0 0.0
    %127 = vmatprep.subr.mxu0 0.0
    %128 = vmatpush2.msra.mxu0 0.0
    %129 = vmatprep.subr.mxu0 0.0
    %130 = vmatpush2.msra.mxu0 0.0
    %131 = vmatprep.subr.mxu0 0.0
    %132 = vmatpush2.msra.mxu0 0.0
    %133 = vmatprep.mubr.f32.mxu0 0.0
    %134 = vmatmul.mubr.f32.gmra.mxu0 %v67
    %v135 = vpop.f32.mrf.mxu0
    %v136 = vadd.f32 %v63, %v135
    %v137 = vpop.f32.mrf.mxu0
    %138 = vdwg.mxu0
    %v139 = vmax.f32 %v136, 0.0
    %v140 = vld [vmem:[#allocation2] sm:$0xff]
    %v141 = vld [vmem:[#allocation2 + $0x8] sm:$0xff]
    %v142 = vld [vmem:[#allocation2 + $0x10] sm:$0xff]
    %v143 = vld [vmem:[#allocation2 + $0x18] sm:$0xff]
    %v144 = vld [vmem:[#allocation2 + $0x20] sm:$0xff]
    %v145 = vld [vmem:[#allocation2 + $0x28] sm:$0xff]
    %v146 = vld [vmem:[#allocation2 + $0x30] sm:$0xff]
    %v147 = vld [vmem:[#allocation2 + $0x38] sm:$0xff]
    %v148 = vld [vmem:[#allocation2 + $0x40] sm:$0xff]
    %v149 = vld [vmem:[#allocation2 + $0x48] sm:$0xff]
    %v150 = vld [vmem:[#allocation2 + $0x50] sm:$0xff]
    %v151 = vld [vmem:[#allocation2 + $0x58] sm:$0xff]
    %v152 = vld [vmem:[#allocation2 + $0x60] sm:$0xff]
    %v153 = vld [vmem:[#allocation2 + $0x68] sm:$0xff]
    %v154 = vld [vmem:[#allocation2 + $0x70] sm:$0xff]
    %v155 = vld [vmem:[#allocation2 + $0x78] sm:$0xff]
    %v156 = vld [vmem:[%s4] sm:$0x1]
    %v158 = vlaneseq
    %v159 = vshrl.u32 %v158, 7
    %v160 = vsub.s32 0, %v159
    %v161 = vrot.slane %v156, %v160
    %163 = vmatprep.subr.mxu0 0.0
    %164 = vmatpush1.msra.mxu0 %v155
    %165 = vmatprep.subr.mxu0 0.0
    %166 = vmatpush1.msra.mxu0 %v154
    %167 = vmatprep.subr.mxu0 0.0
    %168 = vmatpush1.msra.mxu0 %v153
    %169 = vmatprep.subr.mxu0 0.0
    %170 = vmatpush1.msra.mxu0 %v152
    %171 = vmatprep.subr.mxu0 0.0
    %172 = vmatpush1.msra.mxu0 %v151
    %173 = vmatprep.subr.mxu0 0.0
    %174 = vmatpush1.msra.mxu0 %v150
    %175 = vmatprep.subr.mxu0 0.0
    %176 = vmatpush1.msra.mxu0 %v149
    %177 = vmatprep.subr.mxu0 0.0
    %178 = vmatpush1.msra.mxu0 %v148
    %179 = vmatprep.subr.mxu0 0.0
    %180 = vmatpush1.msra.mxu0 %v147
    %181 = vmatprep.subr.mxu0 0.0
    %182 = vmatpush1.msra.mxu0 %v146
    %183 = vmatprep.subr.mxu0 0.0
    %184 = vmatpush1.msra.mxu0 %v145
    %185 = vmatprep.subr.mxu0 0.0
    %186 = vmatpush1.msra.mxu0 %v144
    %187 = vmatprep.subr.mxu0 0.0
    %188 = vmatpush1.msra.mxu0 %v143
    %189 = vmatprep.subr.mxu0 0.0
    %190 = vmatpush1.msra.mxu0 %v142
    %191 = vmatprep.subr.mxu0 0.0
    %192 = vmatpush1.msra.mxu0 %v141
    %193 = vmatprep.subr.mxu0 0.0
    %194 = vmatpush1.msra.mxu0 %v140
    %195 = vmatprep.subr.mxu0 0.0
    %196 = vmatpush2.msra.mxu0 0.0
    %197 = vmatprep.subr.mxu0 0.0
    %198 = vmatpush2.msra.mxu0 0.0
    %199 = vmatprep.subr.mxu0 0.0
    %200 = vmatpush2.msra.mxu0 0.0
    %201 = vmatprep.subr.mxu0 0.0
    %202 = vmatpush2.msra.mxu0 0.0
    %203 = vmatprep.subr.mxu0 0.0
    %204 = vmatpush2.msra.mxu0 0.0
    %205 = vmatprep.subr.mxu0 0.0
    %206 = vmatpush2.msra.mxu0 0.0
    %207 = vmatprep.subr.mxu0 0.0
    %208 = vmatpush2.msra.mxu0 0.0
    %209 = vmatprep.subr.mxu0 0.0
    %210 = vmatpush2.msra.mxu0 0.0
    %211 = vmatprep.subr.mxu0 0.0
    %212 = vmatpush2.msra.mxu0 0.0
    %213 = vmatprep.subr.mxu0 0.0
    %214 = vmatpush2.msra.mxu0 0.0
    %215 = vmatprep.subr.mxu0 0.0
    %216 = vmatpush2.msra.mxu0 0.0
    %217 = vmatprep.subr.mxu0 0.0
    %218 = vmatpush2.msra.mxu0 0.0
    %219 = vmatprep.subr.mxu0 0.0
    %220 = vmatpush2.msra.mxu0 0.0
    %221 = vmatprep.subr.mxu0 0.0
    %222 = vmatpush2.msra.mxu0 0.0
    %223 = vmatprep.subr.mxu0 0.0
    %224 = vmatpush2.msra.mxu0 0.0
    %225 = vmatprep.subr.mxu0 0.0
    %226 = vmatpush2.msra.mxu0 0.0
    %227 = vmatprep.mubr.f32.mxu0 0.0
    %228 = vmatmul.mubr.f32.gmra.mxu0 %v139
    %v229 = vpop.f32.mrf.mxu0
    %v230 = vadd.f32 %v161, %v229
    %v231 = vpop.f32.mrf.mxu0
    %232 = vdwg.mxu0
    %v233 = vmax.f32 %v230, 0.0
    %v234 = vld [vmem:[#allocation5] sm:$0xff]
    %v235 = vld [vmem:[#allocation5 + $0x8] sm:$0xff]
    %v236 = vld [vmem:[#allocation5 + $0x10] sm:$0xff]
    %v237 = vld [vmem:[#allocation5 + $0x18] sm:$0xff]
    %v238 = vld [vmem:[#allocation5 + $0x20] sm:$0xff]
    %v239 = vld [vmem:[#allocation5 + $0x28] sm:$0xff]
    %v240 = vld [vmem:[#allocation5 + $0x30] sm:$0xff]
    %v241 = vld [vmem:[#allocation5 + $0x38] sm:$0xff]
    %v242 = vld [vmem:[#allocation5 + $0x40] sm:$0xff]
    %v243 = vld [vmem:[#allocation5 + $0x48] sm:$0xff]
    %v244 = vld [vmem:[#allocation5 + $0x50] sm:$0xff]
    %v245 = vld [vmem:[#allocation5 + $0x58] sm:$0xff]
    %v246 = vld [vmem:[#allocation5 + $0x60] sm:$0xff]
    %v247 = vld [vmem:[#allocation5 + $0x68] sm:$0xff]
    %v248 = vld [vmem:[#allocation5 + $0x70] sm:$0xff]
    %v249 = vld [vmem:[#allocation5 + $0x78] sm:$0xff]
    %v250 = vld [vmem:[%s6] sm:$0x1]
    %v252 = vlaneseq
    %v253 = vshrl.u32 %v252, 7
    %v254 = vsub.s32 0, %v253
    %v255 = vrot.slane %v250, %v254
    %257 = vmatprep.subr.mxu0 0.0
    %258 = vmatpush1.msra.mxu0 %v249
    %259 = vmatprep.subr.mxu0 0.0
    %260 = vmatpush1.msra.mxu0 %v248
    %261 = vmatprep.subr.mxu0 0.0
    %262 = vmatpush1.msra.mxu0 %v247
    %263 = vmatprep.subr.mxu0 0.0
    %264 = vmatpush1.msra.mxu0 %v246
    %265 = vmatprep.subr.mxu0 0.0
    %266 = vmatpush1.msra.mxu0 %v245
    %267 = vmatprep.subr.mxu0 0.0
    %268 = vmatpush1.msra.mxu0 %v244
    %269 = vmatprep.subr.mxu0 0.0
    %270 = vmatpush1.msra.mxu0 %v243
    %271 = vmatprep.subr.mxu0 0.0
    %272 = vmatpush1.msra.mxu0 %v242
    %273 = vmatprep.subr.mxu0 0.0
    %274 = vmatpush1.msra.mxu0 %v241
    %275 = vmatprep.subr.mxu0 0.0
    %276 = vmatpush1.msra.mxu0 %v240
    %277 = vmatprep.subr.mxu0 0.0
    %278 = vmatpush1.msra.mxu0 %v239
    %279 = vmatprep.subr.mxu0 0.0
    %280 = vmatpush1.msra.mxu0 %v238
    %281 = vmatprep.subr.mxu0 0.0
    %282 = vmatpush1.msra.mxu0 %v237
    %283 = vmatprep.subr.mxu0 0.0
    %284 = vmatpush1.msra.mxu0 %v236
    %285 = vmatprep.subr.mxu0 0.0
    %286 = vmatpush1.msra.mxu0 %v235
    %287 = vmatprep.subr.mxu0 0.0
    %288 = vmatpush1.msra.mxu0 %v234
    %289 = vmatprep.subr.mxu0 0.0
    %290 = vmatpush2.msra.mxu0 0.0
    %291 = vmatprep.subr.mxu0 0.0
    %292 = vmatpush2.msra.mxu0 0.0
    %293 = vmatprep.subr.mxu0 0.0
    %294 = vmatpush2.msra.mxu0 0.0
    %295 = vmatprep.subr.mxu0 0.0
    %296 = vmatpush2.msra.mxu0 0.0
    %297 = vmatprep.subr.mxu0 0.0
    %298 = vmatpush2.msra.mxu0 0.0
    %299 = vmatprep.subr.mxu0 0.0
    %300 = vmatpush2.msra.mxu0 0.0
    %301 = vmatprep.subr.mxu0 0.0
    %302 = vmatpush2.msra.mxu0 0.0
    %303 = vmatprep.subr.mxu0 0.0
    %304 = vmatpush2.msra.mxu0 0.0
    %305 = vmatprep.subr.mxu0 0.0
    %306 = vmatpush2.msra.mxu0 0.0
    %307 = vmatprep.subr.mxu0 0.0
    %308 = vmatpush2.msra.mxu0 0.0
    %309 = vmatprep.subr.mxu0 0.0
    %310 = vmatpush2.msra.mxu0 0.0
    %311 = vmatprep.subr.mxu0 0.0
    %312 = vmatpush2.msra.mxu0 0.0
    %313 = vmatprep.subr.mxu0 0.0
    %314 = vmatpush2.msra.mxu0 0.0
    %315 = vmatprep.subr.mxu0 0.0
    %316 = vmatpush2.msra.mxu0 0.0
    %317 = vmatprep.subr.mxu0 0.0
    %318 = vmatpush2.msra.mxu0 0.0
    %319 = vmatprep.subr.mxu0 0.0
    %320 = vmatpush2.msra.mxu0 0.0
    %321 = vmatprep.mubr.f32.mxu0 0.0
    %322 = vmatmul.mubr.f32.gmra.mxu0 %v233
    %v323 = vpop.f32.mrf.mxu0
    %v324 = vadd.f32 %v255, %v323
    %v325 = vpop.f32.mrf.mxu0
    %326 = vdwg.mxu0
    %327 = vst [vmem:[#allocation7] sm:$0xff] %v324
    // Predicated region
    $region38: #{distributional_q_forward.1} parent=1 // pred_check
      _
    $region39: #{distributional_q_forward.1} parent=1 // pred_check_branch
      %329 = sbr.rel (0) target = $region41
    $region40: #{distributional_q_forward.1} parent=1 // pred_region
      %s331 = ssub.s32 128, 128
      %332 = vsyncadd [#allocation4], %s331
      %s334 = sshll.u32 [#allocation7], 4
      %s335 = int_to_ptr.vmem [resolvable:$true] %s334
      %337 = dma.vmem_to_hbm [thread:$0]  %s335, 128, %s7, [#allocation4]
    $region41: #{distributional_q_forward.1} parent=1 // pred_fallthru
      _
    // Predicated region
    $region42: #{distributional_q_forward.1} parent=1 // pred_check
      _
    $region43: #{distributional_q_forward.1} parent=1 // pred_check_branch
      %339 = sbr.rel (0) target = $region45
    $region44: #{distributional_q_forward.1} parent=1 // pred_region
      %340 = dma.done [#allocation4], 128
    $region45: #{distributional_q_forward.1} parent=1 // pred_fallthru
      _
    %341 = vsyncpa [#allocation3], 1
    %342 = vsyncpa [#allocation6], 1
    %343 = vsyncpa [#allocation4], 1

</llo_original>
